<compile_context>
chip_gen: v6e
topology: v6e:2x2x1
jax: 0.10.0
libtpu: 0.0.40
codegen_flags: <defaults>
</compile_context>

<pallas_src>
import functools

import jax
import jax.numpy as jnp
from jax.experimental import pallas as pl
from jax.experimental.pallas import tpu as pltpu

GAMMA = 1.5
ALPHA = 0.25
SMOOTH = 1e-5
LAMBDA_GD = 0.5
LAMBDA_FD = 2.0


def _round_up(a, b):
    return ((a + b - 1) // b) * b


def _vmem_budgets():
    """Returns (per-input-block budget bytes, vmem_limit_bytes), generation aware."""
    vmem = None
    try:
        info = pltpu.get_tpu_info()
        for name in ("vmem_capacity_bytes", "vmem_bytes"):
            v = getattr(info, name, None)
            if isinstance(v, (int, float)) and v > 0:
                vmem = int(v)
                break
    except Exception:
        vmem = None
    if vmem is None:
        vmem = 64 * 1024 * 1024                    # conservative (v7x-sized) default
    if vmem >= 100 * 1024 * 1024:                  # v5e / v6e: 128 MiB VMEM
        return 6 * 1024 * 1024, 96 * 1024 * 1024
    return 3 * 1024 * 1024, 48 * 1024 * 1024       # v7x: 64 MiB VMEM per TensorCore


def _choose_tiles(R, HW, itemsize_max, itemsize_min, block_budget_bytes):
    """Jointly size (TR, HW_BLK) so each grid step moves a large, well-shaped block."""
    row_align = 8 * max(1, 4 // itemsize_min)      # 8 f32 / 16 bf16 / 32 int8-fp8
    max_elems = max(8 * 128, block_budget_bytes // itemsize_max)
    LANE_CAP = 32768                               # bounds the unrolled lane fold

    # ---- HW (lane) axis ----
    if HW <= min(LANE_CAP, max_elems):
        hw_blk = HW                                # full spatial extent (no masking)
    else:
        limit = min(LANE_CAP, max(128, (max_elems // row_align) // 128 * 128))
        best_div = 0
        for nb in range(limit // 128, 0, -1):      # largest 128-multiple divisor of HW
            cand = nb * 128
            if HW % cand == 0:
                best_div = cand
                break
        # prefer a divisor (no masked last block) unless it wastes > half the budget
        hw_blk = best_div if best_div * 2 >= limit else limit

    # ---- row (sublane) axis ----
    if R <= row_align:
        tr = R                                     # full extent (exempt from x8 rule)
    else:
        fit = max(1, max_elems // hw_blk)
        tr = max(row_align, (fit // row_align) * row_align)
        if R >= 16:
            # keep >= 2 row blocks so v7x's two TensorCores both get work;
            # near-neutral on single-core v5e/v6e.
            tr = min(tr, _round_up(pl.cdiv(R, 2), row_align))
        tr = min(tr, _round_up(R, row_align))
    return tr, hw_blk


def _loss_sums_kernel(out_ref, tgt_ref, sums_ref, acc_ref, *,
                      gamma, alpha, hw, hw_blk, lanes, mask_cols):
    """Accumulates [focal_sum, target_sum, prob_sum, prob*target_sum] per row."""
    j = pl.program_id(1)            # HW (reduction) axis: innermost, "arbitrary"
    nhw = pl.num_programs(1)

    @pl.when(j == 0)
    def _init():
        acc_ref[...] = jnp.zeros_like(acc_ref)

    x = out_ref[...].astype(jnp.float32)   # logits  (TR, HW_BLK)
    t = tgt_ref[...].astype(jnp.float32)   # targets (TR, HW_BLK)

    # One exp per element, reused for the stable BCE log term and the sigmoid:
    #   bce        = max(x, 0) - x*t + log1p(exp(-|x|))
    #   sigmoid(x) = 1/(1+e) if x >= 0 else e/(1+e),   e = exp(-|x|)
    e = jnp.exp(-jnp.abs(x))
    bce = jnp.maximum(x, 0.0) - x * t + jnp.log1p(e)
    d = 1.0 + e
    inv = pl.reciprocal(d, approx=True)
    inv = inv * (2.0 - d * inv)            # one Newton step -> ~f32-exact 1/(1+e)
    p = jnp.where(x >= 0.0, inv, e * inv)

    pt = p * t
    # 1 - p_t = 1 - (t*p + (1-t)*(1-p)) = p + t - 2*p*t   (clamped for sqrt)
    one_minus_pt = jnp.maximum(p + t - 2.0 * pt, 0.0)

    if gamma == 1.5:
        modulating = one_minus_pt * jnp.sqrt(one_minus_pt)   # no pow
    elif gamma == 2.0:
        modulating = one_minus_pt * one_minus_pt
    elif gamma == 1.0:
        modulating = one_minus_pt
    else:
        modulating = jnp.power(one_minus_pt, gamma)

    loss = bce * modulating
    if alpha > 0:
        # t*alpha + (1-t)*(1-alpha) = (1-alpha) + t*(2*alpha - 1)
        loss = loss * ((1.0 - alpha) + t * (2.0 * alpha - 1.0))

    nseg = hw_blk // lanes

    def _lane_fold(q):
        # Fold the lane-blocks of a (TR, HW_BLK) value into a lane-dense
        # (TR, lanes) partial: pure VPU adds on static, lane-block-aligned
        # slices (no cross-lane / XLU work, no relayout).
        parts = [q[:, s * lanes:(s + 1) * lanes] for s in range(nseg)]
        while len(parts) > 1:
            nxt = [parts[k] + parts[k + 1] for k in range(0, len(parts) - 1, 2)]
            if len(parts) % 2:
                nxt.append(parts[-1])
            parts = nxt
        return parts[0]

    def _accumulate(loss_v, t_v, p_v, pt_v):
        acc_ref[0] += _lane_fold(loss_v)
        acc_ref[1] += _lane_fold(t_v)
        acc_ref[2] += _lane_fold(p_v)
        acc_ref[3] += _lane_fold(pt_v)

    if mask_cols:
        @pl.when(j < nhw - 1)
        def _full_blocks():
            _accumulate(loss, t, p, pt)

        @pl.when(j == nhw - 1)
        def _partial_block():
            # Last HW block hangs off the end of the array: lanes past `hw` read
            # unspecified VMEM (possibly NaN/Inf), so select them away from every
            # accumulated quantity (select, NOT multiply-by-0/1-mask).
            col = j * hw_blk + jax.lax.broadcasted_iota(jnp.int32, loss.shape, 1)
            valid = col < hw
            zero = jnp.zeros_like(loss)
            _accumulate(jnp.where(valid, loss, zero),
                        jnp.where(valid, t, zero),
                        jnp.where(valid, p, zero),
                        jnp.where(valid, pt, zero))
    else:
        _accumulate(loss, t, p, pt)

    @pl.when(j == nhw - 1)
    def _finalize():
        # One cross-lane (XLU) reduction per row block per quantity and a single
        # fused write of all four per-row spatial sums.
        totals = [jnp.sum(acc_ref[q], axis=-1, keepdims=True) for q in range(4)]
        sums_ref[...] = jnp.concatenate(totals, axis=-1)


def generalized_dice_focal_loss(output, target,
                                gamma=GAMMA, alpha=ALPHA, smooth=SMOOTH,
                                lambda_gd=LAMBDA_GD, lambda_fd=LAMBDA_FD,
                                _tile_override=None):
    """output, target: (N, C, H, W) arrays (logits / binary targets)."""
    N, C, H, W = output.shape
    R = N * C
    HW = H * W

    # Native dtypes stream from HBM; the f32 cast is per-tile in VMEM.
    out2d = output.reshape(R, HW)
    tgt2d = target.reshape(R, HW)

    isz_out = jnp.dtype(out2d.dtype).itemsize
    isz_tgt = jnp.dtype(tgt2d.dtype).itemsize

    block_budget, vmem_limit = _vmem_budgets()
    if _tile_override is None:
        TR, HW_BLK = _choose_tiles(R, HW, max(isz_out, isz_tgt),
                                   min(isz_out, isz_tgt), block_budget)
    else:
        TR, HW_BLK = _tile_override   # testing hook; must respect (8,128) rules

    n_rows = pl.cdiv(R, TR)           # partial last row block: OOB rows read
    n_hw = pl.cdiv(HW, HW_BLK)        # garbage and their output writes are dropped
    mask_cols = (HW % HW_BLK) != 0
    lanes = 128 if HW_BLK % 128 == 0 else HW_BLK

    kernel = functools.partial(_loss_sums_kernel,
                               gamma=float(gamma), alpha=float(alpha),
                               hw=HW, hw_blk=HW_BLK, lanes=lanes,
                               mask_cols=mask_cols)

    cost = pl.CostEstimate(
        flops=30 * R * HW,
        transcendentals=4 * R * HW,   # exp, log1p, rcp, sqrt
        bytes_accessed=out2d.size * isz_out + tgt2d.size * isz_tgt + R * 4 * 4,
    )

    sums = pl.pallas_call(
        kernel,
        out_shape=jax.ShapeDtypeStruct((R, 4), jnp.float32),
        grid_spec=pltpu.PrefetchScalarGridSpec(
            num_scalar_prefetch=0,
            grid=(n_rows, n_hw),
            in_specs=[
                pl.BlockSpec((TR, HW_BLK), lambda i, j: (i, j)),
                pl.BlockSpec((TR, HW_BLK), lambda i, j: (i, j)),
            ],
            out_specs=pl.BlockSpec((TR, 4), lambda i, j: (i, 0)),
            scratch_shapes=[pltpu.VMEM((4, TR, lanes), jnp.float32)],
        ),
        compiler_params=pltpu.CompilerParams(
            dimension_semantics=("parallel", "arbitrary"),
            vmem_limit_bytes=vmem_limit,
        ),
        cost_estimate=cost,
    )(out2d, tgt2d)

    fsum = sums[:, 0].reshape(N, C)
    tsum = sums[:, 1].reshape(N, C)
    psum = sums[:, 2].reshape(N, C)
    ptsum = sums[:, 3].reshape(N, C)

    # --- focal loss: per-(n,c) spatial mean, then mean over (N, C) ---
    focal = jnp.mean(fsum) / float(HW)

    # --- generalized dice loss (sigmoid=True, include_background=True) ---
    wei = 1.0 / (tsum * tsum + smooth)          # reciprocal(ground_o^2 + smooth)
    intersection = wei * ptsum
    union = wei * (tsum + psum)                 # wei * (ground_o + output_o)
    gldice = 1.0 - 2.0 * intersection / (union + smooth)
    gd = jnp.mean(gldice)

    return lambda_fd * focal + lambda_gd * gd


def _reference(output, target,
               gamma=GAMMA, alpha=ALPHA, smooth=SMOOTH,
               lambda_gd=LAMBDA_GD, lambda_fd=LAMBDA_FD):
    """Pure-JAX reference mirroring the PyTorch module."""
    x = output.astype(jnp.float32)
    t = target.astype(jnp.float32)
    bce = jnp.maximum(x, 0.0) - x * t + jnp.log1p(jnp.exp(-jnp.abs(x)))
    p = jax.nn.sigmoid(x)
    p_t = t * p + (1 - t) * (1 - p)
    loss = bce * (1.0 - p_t) ** gamma
    if alpha > 0:
        loss = loss * (t * alpha + (1 - t) * (1 - alpha))
    focal = jnp.mean(jnp.mean(loss, axis=(2, 3)))

    axes = (2, 3)
    ground_o = jnp.sum(t, axis=axes)
    output_o = jnp.sum(p, axis=axes)
    wei = 1.0 / (ground_o ** 2 + smooth)
    intersection = wei * jnp.sum(p * t, axis=axes)
    union = wei * (ground_o + output_o)
    gd = jnp.mean(1.0 - 2.0 * intersection / (union + smooth))
    return lambda_fd * focal + lambda_gd * gd


if __name__ == "__main__":
    key = jax.random.PRNGKey(0)
    k1, k2, k3, k4 = jax.random.split(key, 4)

    # Case 1: small canonical shape, single-block fast path.
    N, C, H, W = 2, 4, 16, 16
    logits = jax.random.normal(k1, (N, C, H, W), dtype=jnp.float32)
    target = (jax.random.uniform(k2, (N, C, H, W)) > 0.5).astype(jnp.float32)
    loss = jax.block_until_ready(generalized_dice_focal_loss(logits, target))
    ref = _reference(logits, target)
    assert jnp.allclose(loss, ref, rtol=5e-4, atol=1e-5), (loss, ref)

    # Case 2: forced tiny tiles to exercise the multi-step accumulator and the
    # gated partial-column mask (HW = 400 with HW_BLK = 128).
    N2, C2, H2, W2 = 2, 4, 20, 20
    logits2 = jax.random.normal(k3, (N2, C2, H2, W2), dtype=jnp.float32)
    target2 = (jax.random.uniform(k4, (N2, C2, H2, W2)) > 0.5).astype(jnp.float32)
    loss2 = jax.block_until_ready(
        generalized_dice_focal_loss(logits2, target2, _tile_override=(8, 128)))
    ref2 = _reference(logits2, target2)
    assert jnp.allclose(loss2, ref2, rtol=5e-4, atol=1e-5), (loss2, ref2)

    print("KERNEL_OK")
</pallas_src>

<mosaic_0001>
module attributes {stable_mosaic.version = 11 : i64} {
  func.func @_loss_sums_kernel(%arg0: i32, %arg1: i32, %arg2: memref<8x256xf32, #tpu.memory_space<vmem>>, %arg3: memref<8x256xf32, #tpu.memory_space<vmem>>, %arg4: memref<8x4xf32, #tpu.memory_space<vmem>>, %arg5: memref<4x8x128xf32, #tpu.memory_space<vmem>>) attributes {dimension_semantics = [#tpu.dimension_semantics<parallel>, #tpu.dimension_semantics<arbitrary>], iteration_bounds = array<i64: 1, 1>, scalar_prefetch = 0 : i64, scratch_operands = 1 : i64, tpu.core_type = #tpu.core_type<tc>, window_params = [{transform_indices = @transform_0, window_bounds = array<i64: 8, 256>}, {transform_indices = @transform_1, window_bounds = array<i64: 8, 256>}, {transform_indices = @transform_2, window_bounds = array<i64: 8, 4>}]} {
    %c0_i32 = arith.constant 0 : i32
    %0 = arith.cmpi eq, %arg1, %c0_i32 : i32
    %1 = arith.extui %0 : i1 to i32
    %c0_i32_0 = arith.constant 0 : i32
    %2 = arith.cmpi ne, %1, %c0_i32_0 : i32
    scf.if %2 {
      %cst_35 = arith.constant 0.000000e+00 : f32
      %80 = vector.broadcast %cst_35 : f32 to vector<4x8x128xf32>
      %c0_36 = arith.constant 0 : index
      %c0_37 = arith.constant 0 : index
      %c0_38 = arith.constant 0 : index
      %81 = vector.load %arg5[%c0_36, %c0_37, %c0_38] : memref<4x8x128xf32, #tpu.memory_space<vmem>>, vector<4x8x128xf32>
      tpu.vector_store %arg5[%c0_36, %c0_37, %c0_38], %80 {strides = array<i32>} : memref<4x8x128xf32, #tpu.memory_space<vmem>>, vector<4x8x128xf32>,
    } else {
    }
    %c0 = arith.constant 0 : index
    %c0_1 = arith.constant 0 : index
    %3 = vector.load %arg2[%c0, %c0_1] : memref<8x256xf32, #tpu.memory_space<vmem>>, vector<8x256xf32>
    %c0_2 = arith.constant 0 : index
    %c0_3 = arith.constant 0 : index
    %4 = vector.load %arg3[%c0_2, %c0_3] : memref<8x256xf32, #tpu.memory_space<vmem>>, vector<8x256xf32>
    %5 = math.absf %3 : vector<8x256xf32>
    %cst = arith.constant 0.000000e+00 : f32
    %6 = vector.broadcast %cst : f32 to vector<8x256xf32>
    %7 = arith.subf %6, %5 : vector<8x256xf32>
    %8 = math.exp %7 : vector<8x256xf32>
    %cst_4 = arith.constant 0.000000e+00 : f32
    %9 = vector.broadcast %cst_4 : f32 to vector<8x256xf32>
    %10 = arith.maximumf %3, %9 : vector<8x256xf32>
    %11 = arith.mulf %3, %4 : vector<8x256xf32>
    %12 = arith.subf %10, %11 : vector<8x256xf32>
    %13 = math.log1p %8 : vector<8x256xf32>
    %14 = arith.addf %12, %13 : vector<8x256xf32>
    %cst_5 = arith.constant 1.000000e+00 : f32
    %15 = vector.broadcast %cst_5 : f32 to vector<8x256xf32>
    %16 = arith.addf %15, %8 : vector<8x256xf32>
    %17 = tpu.reciprocal %16 {approx = true} : vector<8x256xf32> -> vector<8x256xf32>
    %18 = arith.mulf %16, %17 : vector<8x256xf32>
    %cst_6 = arith.constant 2.000000e+00 : f32
    %19 = vector.broadcast %cst_6 : f32 to vector<8x256xf32>
    %20 = arith.subf %19, %18 : vector<8x256xf32>
    %21 = arith.mulf %17, %20 : vector<8x256xf32>
    %cst_7 = arith.constant 0.000000e+00 : f32
    %22 = vector.broadcast %cst_7 : f32 to vector<8x256xf32>
    %23 = arith.cmpf oge, %3, %22 : vector<8x256xf32>
    %24 = arith.mulf %8, %21 : vector<8x256xf32>
    %25 = arith.select %23, %21, %24 : vector<8x256xi1>, vector<8x256xf32>
    %26 = arith.mulf %25, %4 : vector<8x256xf32>
    %27 = arith.addf %25, %4 : vector<8x256xf32>
    %cst_8 = arith.constant 2.000000e+00 : f32
    %28 = vector.broadcast %cst_8 : f32 to vector<8x256xf32>
    %29 = arith.mulf %28, %26 : vector<8x256xf32>
    %30 = arith.subf %27, %29 : vector<8x256xf32>
    %cst_9 = arith.constant 0.000000e+00 : f32
    %31 = vector.broadcast %cst_9 : f32 to vector<8x256xf32>
    %32 = arith.maximumf %30, %31 : vector<8x256xf32>
    %33 = math.sqrt %32 : vector<8x256xf32>
    %34 = arith.mulf %32, %33 : vector<8x256xf32>
    %35 = arith.mulf %14, %34 : vector<8x256xf32>
    %cst_10 = arith.constant -5.000000e-01 : f32
    %36 = vector.broadcast %cst_10 : f32 to vector<8x256xf32>
    %37 = arith.mulf %4, %36 : vector<8x256xf32>
    %cst_11 = arith.constant 7.500000e-01 : f32
    %38 = vector.broadcast %cst_11 : f32 to vector<8x256xf32>
    %39 = arith.addf %38, %37 : vector<8x256xf32>
    %40 = arith.mulf %35, %39 : vector<8x256xf32>
    %c0_12 = arith.constant 0 : index
    %c0_13 = arith.constant 0 : index
    %c0_14 = arith.constant 0 : index
    %41 = vector.load %arg5[%c0_12, %c0_13, %c0_14] : memref<4x8x128xf32, #tpu.memory_space<vmem>>, vector<1x8x128xf32>
    %42 = vector.shape_cast %41 : vector<1x8x128xf32> to vector<8x128xf32>
    %43 = vector.extract_strided_slice %40 {offsets = [0, 0], sizes = [8, 128], strides = [1, 1]} : vector<8x256xf32> to vector<8x128xf32>
    %44 = vector.extract_strided_slice %40 {offsets = [0, 128], sizes = [8, 128], strides = [1, 1]} : vector<8x256xf32> to vector<8x128xf32>
    %45 = arith.addf %43, %44 : vector<8x128xf32>
    %46 = arith.addf %42, %45 : vector<8x128xf32>
    %c0_15 = arith.constant 0 : index
    %c0_16 = arith.constant 0 : index
    %c0_17 = arith.constant 0 : index
    %47 = vector.load %arg5[%c0_15, %c0_16, %c0_17] : memref<4x8x128xf32, #tpu.memory_space<vmem>>, vector<1x8x128xf32>
    %48 = vector.shape_cast %47 : vector<1x8x128xf32> to vector<8x128xf32>
    %49 = vector.shape_cast %46 : vector<8x128xf32> to vector<1x8x128xf32>
    tpu.vector_store %arg5[%c0_15, %c0_16, %c0_17], %49 {strides = array<i32>} : memref<4x8x128xf32, #tpu.memory_space<vmem>>, vector<1x8x128xf32>,
    %c1 = arith.constant 1 : index
    %c0_18 = arith.constant 0 : index
    %c0_19 = arith.constant 0 : index
    %50 = vector.load %arg5[%c1, %c0_18, %c0_19] : memref<4x8x128xf32, #tpu.memory_space<vmem>>, vector<1x8x128xf32>
    %51 = vector.shape_cast %50 : vector<1x8x128xf32> to vector<8x128xf32>
    %52 = vector.extract_strided_slice %4 {offsets = [0, 0], sizes = [8, 128], strides = [1, 1]} : vector<8x256xf32> to vector<8x128xf32>
    %53 = vector.extract_strided_slice %4 {offsets = [0, 128], sizes = [8, 128], strides = [1, 1]} : vector<8x256xf32> to vector<8x128xf32>
    %54 = arith.addf %52, %53 : vector<8x128xf32>
    %55 = arith.addf %51, %54 : vector<8x128xf32>
    %c1_20 = arith.constant 1 : index
    %c0_21 = arith.constant 0 : index
    %c0_22 = arith.constant 0 : index
    %56 = vector.load %arg5[%c1_20, %c0_21, %c0_22] : memref<4x8x128xf32, #tpu.memory_space<vmem>>, vector<1x8x128xf32>
    %57 = vector.shape_cast %56 : vector<1x8x128xf32> to vector<8x128xf32>
    %58 = vector.shape_cast %55 : vector<8x128xf32> to vector<1x8x128xf32>
    tpu.vector_store %arg5[%c1_20, %c0_21, %c0_22], %58 {strides = array<i32>} : memref<4x8x128xf32, #tpu.memory_space<vmem>>, vector<1x8x128xf32>,
    %c2 = arith.constant 2 : index
    %c0_23 = arith.constant 0 : index
    %c0_24 = arith.constant 0 : index
    %59 = vector.load %arg5[%c2, %c0_23, %c0_24] : memref<4x8x128xf32, #tpu.memory_space<vmem>>, vector<1x8x128xf32>
    %60 = vector.shape_cast %59 : vector<1x8x128xf32> to vector<8x128xf32>
    %61 = vector.extract_strided_slice %25 {offsets = [0, 0], sizes = [8, 128], strides = [1, 1]} : vector<8x256xf32> to vector<8x128xf32>
    %62 = vector.extract_strided_slice %25 {offsets = [0, 128], sizes = [8, 128], strides = [1, 1]} : vector<8x256xf32> to vector<8x128xf32>
    %63 = arith.addf %61, %62 : vector<8x128xf32>
    %64 = arith.addf %60, %63 : vector<8x128xf32>
    %c2_25 = arith.constant 2 : index
    %c0_26 = arith.constant 0 : index
    %c0_27 = arith.constant 0 : index
    %65 = vector.load %arg5[%c2_25, %c0_26, %c0_27] : memref<4x8x128xf32, #tpu.memory_space<vmem>>, vector<1x8x128xf32>
    %66 = vector.shape_cast %65 : vector<1x8x128xf32> to vector<8x128xf32>
    %67 = vector.shape_cast %64 : vector<8x128xf32> to vector<1x8x128xf32>
    tpu.vector_store %arg5[%c2_25, %c0_26, %c0_27], %67 {strides = array<i32>} : memref<4x8x128xf32, #tpu.memory_space<vmem>>, vector<1x8x128xf32>,
    %c3 = arith.constant 3 : index
    %c0_28 = arith.constant 0 : index
    %c0_29 = arith.constant 0 : index
    %68 = vector.load %arg5[%c3, %c0_28, %c0_29] : memref<4x8x128xf32, #tpu.memory_space<vmem>>, vector<1x8x128xf32>
    %69 = vector.shape_cast %68 : vector<1x8x128xf32> to vector<8x128xf32>
    %70 = vector.extract_strided_slice %26 {offsets = [0, 0], sizes = [8, 128], strides = [1, 1]} : vector<8x256xf32> to vector<8x128xf32>
    %71 = vector.extract_strided_slice %26 {offsets = [0, 128], sizes = [8, 128], strides = [1, 1]} : vector<8x256xf32> to vector<8x128xf32>
    %72 = arith.addf %70, %71 : vector<8x128xf32>
    %73 = arith.addf %69, %72 : vector<8x128xf32>
    %c3_30 = arith.constant 3 : index
    %c0_31 = arith.constant 0 : index
    %c0_32 = arith.constant 0 : index
    %74 = vector.load %arg5[%c3_30, %c0_31, %c0_32] : memref<4x8x128xf32, #tpu.memory_space<vmem>>, vector<1x8x128xf32>
    %75 = vector.shape_cast %74 : vector<1x8x128xf32> to vector<8x128xf32>
    %76 = vector.shape_cast %73 : vector<8x128xf32> to vector<1x8x128xf32>
    tpu.vector_store %arg5[%c3_30, %c0_31, %c0_32], %76 {strides = array<i32>} : memref<4x8x128xf32, #tpu.memory_space<vmem>>, vector<1x8x128xf32>,
    %c0_i32_33 = arith.constant 0 : i32
    %77 = arith.cmpi eq, %arg1, %c0_i32_33 : i32
    %78 = arith.extui %77 : i1 to i32
    %c0_i32_34 = arith.constant 0 : i32
    %79 = arith.cmpi ne, %78, %c0_i32_34 : i32
    scf.if %79 {
      %c0_35 = arith.constant 0 : index
      %c0_36 = arith.constant 0 : index
      %c0_37 = arith.constant 0 : index
      %80 = vector.load %arg5[%c0_35, %c0_36, %c0_37] : memref<4x8x128xf32, #tpu.memory_space<vmem>>, vector<1x8x128xf32>
      %81 = vector.shape_cast %80 : vector<1x8x128xf32> to vector<8x128xf32>
      %cst_38 = arith.constant dense<0.000000e+00> : vector<8xf32>
      %82 = vector.multi_reduction <add>, %81, %cst_38 [1] : vector<8x128xf32> to vector<8xf32>
      %83 = vector.shape_cast %82 : vector<8xf32> to vector<8x1xf32>
      %c1_39 = arith.constant 1 : index
      %c0_40 = arith.constant 0 : index
      %c0_41 = arith.constant 0 : index
      %84 = vector.load %arg5[%c1_39, %c0_40, %c0_41] : memref<4x8x128xf32, #tpu.memory_space<vmem>>, vector<1x8x128xf32>
      %85 = vector.shape_cast %84 : vector<1x8x128xf32> to vector<8x128xf32>
      %cst_42 = arith.constant dense<0.000000e+00> : vector<8xf32>
      %86 = vector.multi_reduction <add>, %85, %cst_42 [1] : vector<8x128xf32> to vector<8xf32>
      %87 = vector.shape_cast %86 : vector<8xf32> to vector<8x1xf32>
      %c2_43 = arith.constant 2 : index
      %c0_44 = arith.constant 0 : index
      %c0_45 = arith.constant 0 : index
      %88 = vector.load %arg5[%c2_43, %c0_44, %c0_45] : memref<4x8x128xf32, #tpu.memory_space<vmem>>, vector<1x8x128xf32>
      %89 = vector.shape_cast %88 : vector<1x8x128xf32> to vector<8x128xf32>
      %cst_46 = arith.constant dense<0.000000e+00> : vector<8xf32>
      %90 = vector.multi_reduction <add>, %89, %cst_46 [1] : vector<8x128xf32> to vector<8xf32>
      %91 = vector.shape_cast %90 : vector<8xf32> to vector<8x1xf32>
      %c3_47 = arith.constant 3 : index
      %c0_48 = arith.constant 0 : index
      %c0_49 = arith.constant 0 : index
      %92 = vector.load %arg5[%c3_47, %c0_48, %c0_49] : memref<4x8x128xf32, #tpu.memory_space<vmem>>, vector<1x8x128xf32>
      %93 = vector.shape_cast %92 : vector<1x8x128xf32> to vector<8x128xf32>
      %cst_50 = arith.constant dense<0.000000e+00> : vector<8xf32>
      %94 = vector.multi_reduction <add>, %93, %cst_50 [1] : vector<8x128xf32> to vector<8xf32>
      %95 = vector.shape_cast %94 : vector<8xf32> to vector<8x1xf32>
      %96 = tpu.concatenate %83, %87, %91, %95 in 1 : vector<8x1xf32>, vector<8x1xf32>, vector<8x1xf32>, vector<8x1xf32> -> vector<8x4xf32>
      %c0_51 = arith.constant 0 : index
      %c0_52 = arith.constant 0 : index
      %97 = vector.load %arg4[%c0_51, %c0_52] : memref<8x4xf32, #tpu.memory_space<vmem>>, vector<8x4xf32>
      tpu.vector_store %arg4[%c0_51, %c0_52], %96 {strides = array<i32>} : memref<8x4xf32, #tpu.memory_space<vmem>>, vector<8x4xf32>,
    } else {
    }
    return
  }
  func.func @transform_0(%arg0: i32, %arg1: i32) -> (i32, i32) {
    %c0_i32 = arith.constant 0 : i32
    return %arg0, %arg1 : i32, i32
  }
  func.func @transform_1(%arg0: i32, %arg1: i32) -> (i32, i32) {
    %c0_i32 = arith.constant 0 : i32
    return %arg0, %arg1 : i32, i32
  }
  func.func @transform_2(%arg0: i32, %arg1: i32) -> (i32, i32) {
    %c0_i32 = arith.constant 0 : i32
    %c0_i32_0 = arith.constant 0 : i32
    return %arg0, %c0_i32 : i32, i32
  }
}

</mosaic_0001>

<llo_original>
// kernel: tpu_custom_call.1
$region0: #{tpu_custom_call.1}
  #allocation0 [shape = 'u32[]', space=smem, size = 0x4, offset = 0x4, fixed_abs, tag = 'smem constant byte address 0x4 - core index']
  #allocation1 [shape = 'u32[144,128]{1,0:T(1,128)}', space=vmem, size = 0x12000, scoped, tag = 'internal scratch']
  #allocation2 [shape = 'f32[4,8,128]{2,1,0:T(8,128)}', space=vmem, size = 0x4000, scoped, tag = 'scratch operand']
  %s0 = inlined_call_operand.hbm [shape: f32[8,256], index: 0, kind: input, shape index: {}]
  %s1 = inlined_call_operand.hbm [shape: f32[8,256], index: 1, kind: input, shape index: {}]
  %s2 = inlined_call_operand.vmem [shape: f32[8,4], index: 2, kind: output, shape index: {}]
  %s3 = sld [smem:[#allocation0]]
  $region34: #{tpu_custom_call.1} parent=0
    _
  %s5 = ssub.s32 1, %s3
  %s6 = scalar_select 0, %s5, %s3
  $region1: #{tpu_custom_call.1} parent=0
    #allocation3 [shape = 'u8[8192]{0}', space=vmem, size = 0x2000, scoped, tag = 'input window, operand 0, single buffered']
    #allocation4 [shape = 's32[1]{0}', space=sflag, size = 0x4, scoped, tag = 'scoped memory for tpu_custom_call.1']
    #allocation5 [shape = 'u8[8192]{0}', space=vmem, size = 0x2000, scoped, tag = 'input window, operand 1, single buffered']
    #allocation6 [shape = 's32[1]{0}', space=sflag, size = 0x4, scoped, tag = 'scoped memory for tpu_custom_call.1']
    %7 = vsyncpa [#allocation4], 0
    %8 = vsyncpa [#allocation6], 0
    // Predicated region
    $region2: #{tpu_custom_call.1} parent=1 // pred_check
      _
    $region3: #{tpu_custom_call.1} parent=1 // pred_check_branch
      %10 = sbr.rel (0) target = $region5
    $region4: #{tpu_custom_call.1} parent=1 // pred_region
      %s12 = ssub.s32 256, 256
      %13 = vsyncadd [#allocation4], %s12
      %s15 = sshll.u32 [#allocation3], 4
      %s16 = int_to_ptr.vmem [resolvable:$true] %s15
      %18 = dma.hbm_to_vmem [thread:$0]  %s0, 256, %s16, [#allocation4]
    $region5: #{tpu_custom_call.1} parent=1 // pred_fallthru
      _
    // Predicated region
    $region6: #{tpu_custom_call.1} parent=1 // pred_check
      _
    $region7: #{tpu_custom_call.1} parent=1 // pred_check_branch
      %20 = sbr.rel (0) target = $region9
    $region8: #{tpu_custom_call.1} parent=1 // pred_region
      %s22 = ssub.s32 256, 256
      %23 = vsyncadd [#allocation6], %s22
      %s25 = sshll.u32 [#allocation5], 4
      %s26 = int_to_ptr.vmem [resolvable:$true] %s25
      %28 = dma.hbm_to_vmem [thread:$0]  %s1, 256, %s26, [#allocation6]
    $region9: #{tpu_custom_call.1} parent=1 // pred_fallthru
      _
    // Predicated region
    $region10: #{tpu_custom_call.1} parent=1 // pred_check
      _
    $region11: #{tpu_custom_call.1} parent=1 // pred_check_branch
      %30 = sbr.rel (0) target = $region13
    $region12: #{tpu_custom_call.1} parent=1 // pred_region
      %31 = dma.done [#allocation4], 256
    $region13: #{tpu_custom_call.1} parent=1 // pred_fallthru
      _
    // Predicated region
    $region14: #{tpu_custom_call.1} parent=1 // pred_check
      _
    $region15: #{tpu_custom_call.1} parent=1 // pred_check_branch
      %33 = sbr.rel (0) target = $region17
    $region16: #{tpu_custom_call.1} parent=1 // pred_region
      %34 = dma.done [#allocation6], 256
    $region17: #{tpu_custom_call.1} parent=1 // pred_fallthru
      _
    %p35 = scmp.eq.s32.totalorder 0, 0
    // Predicated region
    $region18: #{tpu_custom_call.1} parent=1 // pred_check
      %p36 = pneg %p35
    $region19: #{tpu_custom_call.1} parent=1 // pred_check_branch
      %38 = sbr.rel (%p36) target = $region21
    $region20: #{tpu_custom_call.1} parent=1 // pred_region
      %39 = vst [vmem:[#allocation2] sm:$0xff] 0.0
      %40 = vst [vmem:[#allocation2 + $0x8] sm:$0xff] 0.0
      %41 = vst [vmem:[#allocation2 + $0x10] sm:$0xff] 0.0
      %42 = vst [vmem:[#allocation2 + $0x18] sm:$0xff] 0.0
    $region21: #{tpu_custom_call.1} parent=1 // pred_fallthru
      _
    %v43 = vld [vmem:[#allocation3] sm:$0xff]
    %v44 = vld [vmem:[#allocation3 + $0x8] sm:$0xff]
    %v45 = vld [vmem:[#allocation5] sm:$0xff]
    %v46 = vld [vmem:[#allocation5 + $0x8] sm:$0xff]
    %v47 = vand.u32 2147483647, %v43
    %v48 = vand.u32 2147483647, %v44
    %v49 = vsub.f32 0.0, %v47
    %v50 = vsub.f32 0.0, %v48
    %v51 = vmul.f32 %v49, 1.442695
    %v52 = vpow.pop %v51
    %v53 = vmul.f32 %v50, 1.442695
    %v54 = vpow.pop %v53
    %v55 = vmax.f32 %v43, 0.0
    %v56 = vmax.f32 %v44, 0.0
    %v57 = vmul.f32 %v43, %v45
    %v58 = vmul.f32 %v44, %v46
    %v59 = vsub.f32 %v55, %v57
    %v60 = vsub.f32 %v56, %v58
    %v61 = vadd.f32 %v52, 1.0
    %v62 = vlog2.pop %v61
    %v63 = vmul.f32 %v62, 0.6931472
    %v64 = vmul.f32 -0.5, %v52
    %v65 = vadd.f32 %v64, 1.0
    %v66 = vmul.f32 %v65, %v52
    %v67 = vand.u32 2147483647, %v52
    %vm68 = vcmp.lt.f32.partialorder %v67, 0.0004427343
    %v69 = vsel %vm68, %v66, %v63
    %v70 = vadd.f32 %v54, 1.0
    %v71 = vlog2.pop %v70
    %v72 = vmul.f32 %v71, 0.6931472
    %v73 = vmul.f32 -0.5, %v54
    %v74 = vadd.f32 %v73, 1.0
    %v75 = vmul.f32 %v74, %v54
    %v76 = vand.u32 2147483647, %v54
    %vm77 = vcmp.lt.f32.partialorder %v76, 0.0004427343
    %v78 = vsel %vm77, %v75, %v72
    %v79 = vadd.f32 %v59, %v69
    %v80 = vadd.f32 %v60, %v78
    %v81 = vadd.f32 %v52, 1.0
    %v82 = vadd.f32 %v54, 1.0
    %v83 = vrcp.pop %v81
    %v84 = vrcp.pop %v82
    %v85 = vmul.f32 %v81, %v83
    %v86 = vmul.f32 %v82, %v84
    %v87 = vsub.f32 2.0, %v85
    %v88 = vsub.f32 2.0, %v86
    %v89 = vmul.f32 %v83, %v87
    %v90 = vmul.f32 %v84, %v88
    %vm91 = vcmp.ge.f32.partialorder %v43, 0.0
    %vm92 = vcmp.ge.f32.partialorder %v44, 0.0
    %v93 = vmul.f32 %v52, %v89
    %v94 = vmul.f32 %v54, %v90
    %v95 = vsel %vm91, %v89, %v93
    %v96 = vsel %vm92, %v90, %v94
    %v97 = vmul.f32 %v95, %v45
    %v98 = vmul.f32 %v96, %v46
    %v99 = vadd.f32 %v95, %v45
    %v100 = vadd.f32 %v96, %v46
    %v101 = vmul.f32 %v97, 2.0
    %v102 = vmul.f32 %v98, 2.0
    %v103 = vsub.f32 %v99, %v101
    %v104 = vsub.f32 %v100, %v102
    %v105 = vmax.f32 %v103, 0.0
    %v106 = vmax.f32 %v104, 0.0
    %v107 = vrsqrt.pop %v105
    %v108 = vmul.f32 %v105, %v107
    %vm109 = vcmp.eq.f32.partialorder %v105, inf
    %v110 = vsel %vm109, %v105, %v108
    %vm111 = vcmp.eq.f32.partialorder %v105, 0.0
    %v112 = vand.u32 %v105, 2147483648
    %v113 = vsel %vm111, %v112, %v110
    %v114 = vrsqrt.pop %v106
    %v115 = vmul.f32 %v106, %v114
    %vm116 = vcmp.eq.f32.partialorder %v106, inf
    %v117 = vsel %vm116, %v106, %v115
    %vm118 = vcmp.eq.f32.partialorder %v106, 0.0
    %v119 = vand.u32 %v106, 2147483648
    %v120 = vsel %vm118, %v119, %v117
    %v121 = vmul.f32 %v105, %v113
    %v122 = vmul.f32 %v106, %v120
    %v123 = vmul.f32 %v79, %v121
    %v124 = vmul.f32 %v80, %v122
    %v125 = vmul.f32 %v45, -0.5
    %v126 = vmul.f32 %v46, -0.5
    %v127 = vadd.f32 %v125, 0.75
    %v128 = vadd.f32 %v126, 0.75
    %v129 = vmul.f32 %v123, %v127
    %v130 = vmul.f32 %v124, %v128
    %v131 = vld [vmem:[#allocation2] sm:$0xff]
    %v132 = vadd.f32 %v129, %v130
    %v133 = vadd.f32 %v131, %v132
    %134 = vst [vmem:[#allocation2] sm:$0xff] %v133
    %s135 = scalar_lea.vmem [#allocation2], 8
    %v136 = vld [vmem:[%s135] sm:$0xff]
    %v137 = vadd.f32 %v45, %v46
    %v138 = vadd.f32 %v136, %v137
    %139 = vst [vmem:[%s135] sm:$0xff] %v138
    %s140 = scalar_lea.vmem [#allocation2], 16
    %v141 = vld [vmem:[%s140] sm:$0xff]
    %v142 = vadd.f32 %v95, %v96
    %v143 = vadd.f32 %v141, %v142
    %144 = vst [vmem:[%s140] sm:$0xff] %v143
    %s145 = scalar_lea.vmem [#allocation2], 24
    %v146 = vld [vmem:[%s145] sm:$0xff]
    %v147 = vadd.f32 %v97, %v98
    %v148 = vadd.f32 %v146, %v147
    %149 = vst [vmem:[%s145] sm:$0xff] %v148
    // Predicated region
    $region22: #{tpu_custom_call.1} parent=1 // pred_check
      %p150 = pneg %p35
    $region23: #{tpu_custom_call.1} parent=1 // pred_check_branch
      %152 = sbr.rel (%p150) target = $region25
    $region24: #{tpu_custom_call.1} parent=1 // pred_region
      %v153 = vld [vmem:[#allocation2] sm:$0xff]
      %154 = vadd.xlane.f32.xlu0 %v153
      %v155 = vpop.xlane.xlu0 %154
      %v156 = vld [vmem:[%s135] sm:$0xff]
      %157 = vadd.xlane.f32.xlu0 %v156
      %v158 = vpop.xlane.xlu0 %157
      %v159 = vld [vmem:[%s140] sm:$0xff]
      %160 = vadd.xlane.f32.xlu0 %v159
      %v161 = vpop.xlane.xlu0 %160
      %v162 = vld [vmem:[%s145] sm:$0xff]
      %163 = vadd.xlane.f32.xlu0 %v162
      %v164 = vpop.xlane.xlu0 %163
      %vm165 = vcmask 7168
      %v166 = vsel %vm165, %v155, %v158
      %vm167 = vcmask 15360
      %v168 = vsel %vm167, %v166, %v161
      %vm169 = vcmask 23552
      %v170 = vsel %vm169, %v168, %v164
      %vm171 = vcmask 31744
      %172 = vst.msk [vmem:[%s2] sm:$0xff] %vm171, %v170
    $region25: #{tpu_custom_call.1} parent=1 // pred_fallthru
      _
    // Predicated region
    $region26: #{tpu_custom_call.1} parent=1 // pred_check
      _
    $region27: #{tpu_custom_call.1} parent=1 // pred_check_branch
      %174 = sbr.rel (0) target = $region29
    $region28: #{tpu_custom_call.1} parent=1 // pred_region
      _
    $region29: #{tpu_custom_call.1} parent=1 // pred_fallthru
      _
    // Predicated region
    $region30: #{tpu_custom_call.1} parent=1 // pred_check
      _
    $region31: #{tpu_custom_call.1} parent=1 // pred_check_branch
      %176 = sbr.rel (0) target = $region33
    $region32: #{tpu_custom_call.1} parent=1 // pred_region
      _
    $region33: #{tpu_custom_call.1} parent=1 // pred_fallthru
      _
    %177 = vsyncpa [#allocation4], 1
    %178 = vsyncpa [#allocation6], 1

</llo_original>
